<compile_context>
chip_gen: v7x
topology: tpu7x:2x2x1
jax: 0.10.0
libtpu: 0.0.40
codegen_flags: <defaults>
</compile_context>

<pallas_src>
import functools

import numpy as np
import jax
import jax.numpy as jnp
from jax.experimental import pallas as pl
from jax.experimental.pallas import tpu as pltpu


# -----------------------------------------------------------------------------
# Static model configuration: ResNet(ResidualBlock, img_size=16, in_channel=4,
# out_channels=[8,8,8], layers=[1,1,1], fc_neurons=[32,16], num_classes=1)
# -----------------------------------------------------------------------------
BATCH = 2
IN_CHANNEL = 4
IMG = 16
OUT_CHANNELS = (8, 8, 8)
LAYERS = (1, 1, 1)
FC_NEURONS = (32, 16)
NUM_CLASSES = 1

HW = IMG * IMG                       # 256 spatial positions per image
L = BATCH * HW                       # 512 = flattened (n, y, x) lane axis
POOL = IMG - 2                       # 14 = AvgPool2d(3, stride=1) output side
C_MAX = max(IN_CHANNEL, *OUT_CHANNELS)   # 8 -> every activation is (8, L)
KTAP = 9 * C_MAX                     # 72 = stacked-tap contraction length
BN_EPS = 1e-5


def _vmem():
    return pl.BlockSpec(memory_space=pltpu.MemorySpace.VMEM)


def _block_structure():
    """Static (cin, cout, has_downsample) list for every residual block."""
    blocks = []
    cin = IN_CHANNEL
    for cout, n in zip(OUT_CHANNELS, LAYERS):
        for b in range(n):
            bcin = cin if b == 0 else cout
            blocks.append((bcin, cout, bcin != cout))   # stride is always 1
        cin = cout
    return tuple(blocks)


# -----------------------------------------------------------------------------
# pltpu.roll direction probe (one tiny eager kernel, cached).
# Returns sign a such that pltpu.roll(x, (a*s) % n, axis)[..., f] == x[..., (f+s) % n].
# -----------------------------------------------------------------------------
@functools.cache
def _roll_sign():
    def probe(x_ref, o_ref):
        o_ref[...] = pltpu.roll(x_ref[...], 1, axis=1)

    x = jnp.broadcast_to(jnp.arange(128, dtype=jnp.float32), (8, 128))
    y = pl.pallas_call(
        probe,
        out_shape=jax.ShapeDtypeStruct((8, 128), jnp.float32),
        in_specs=[_vmem()],
        out_specs=_vmem(),
    )(x)
    # numpy convention (out[f] = in[f-1]) -> out[0, 1] == in[0, 0] == 0.
    return -1 if float(y[0, 1]) == 0.0 else 1


# -----------------------------------------------------------------------------
# In-kernel building blocks (values are channels-major (C, L) slabs)
# -----------------------------------------------------------------------------
def _shift_lanes(x, s, sign):
    """out[..., f] = x[..., (f + s) % L]  (XLU lane rotation)."""
    s = s % L
    if s == 0:
        return x
    return pltpu.roll(x, (sign * s) % L, axis=1)


def _batchnorm(x, gamma, beta, relu):
    """Training-mode BatchNorm2d (batch stats, biased variance) + optional ReLU.

    One-pass sum / sum-of-squares so the two lane reductions are independent.
    """
    inv_n = 1.0 / x.shape[-1]
    s1 = jnp.sum(x, axis=-1, keepdims=True)
    s2 = jnp.sum(x * x, axis=-1, keepdims=True)
    mean = s1 * inv_n
    var = jnp.maximum(s2 * inv_n - mean * mean, 0.0)
    y = (x - mean) * (gamma * jax.lax.rsqrt(var + BN_EPS)) + beta
    return jnp.maximum(y, 0.0) if relu else y


def _make_kernel(blocks, n_inputs, roll_sign):
    def kernel(*refs):
        out_ref = refs[n_inputs]
        it = iter(refs[:n_inputs])

        x_ref = next(it)
        masks_ref = next(it)          # (9, 1, L) zero-padding masks
        diag_ref = next(it)           # (B*C, C*F1) block-diagonal selector
        seg_ref = next(it)            # (B, B*C)    per-image segment sum
        fold_ref = next(it)           # (C*F1, F1)  channel fold

        def conv(x, w):
            """3x3 conv / stride 1 / pad 1 as ONE matmul over stacked taps."""
            taps = []
            for k in range(9):
                dy, dx = divmod(k, 3)
                s = (dy - 1) * IMG + (dx - 1)
                if k == 4:            # center tap: no shift, mask is all ones
                    taps.append(x)
                else:
                    taps.append(_shift_lanes(x, s, roll_sign) * masks_ref[k])
            t = jnp.concatenate(taps, axis=0)               # (KTAP, L), in vregs
            return jnp.dot(w, t, preferred_element_type=jnp.float32)

        # --- stem: conv3x3 -> BN -> ReLU ------------------------------------
        w, g, b = next(it)[...], next(it)[...], next(it)[...]
        act = _batchnorm(conv(x_ref[...], w), g, b, relu=True)

        # --- residual blocks -------------------------------------------------
        for _cin, _cout, has_ds in blocks:
            w1, g1, b1 = next(it)[...], next(it)[...], next(it)[...]
            w2, g2, b2 = next(it)[...], next(it)[...], next(it)[...]
            if has_ds:
                # conv1 and downsample fused: (2*C_MAX, KTAP) weight, one matmul,
                # one fused BN (per-row stats are independent).
                y = _batchnorm(conv(act, w1), g1, b1, relu=False)
                out = jnp.maximum(y[:C_MAX, :], 0.0)        # conv1 path (+ReLU)
                res = y[C_MAX:, :]                          # downsample path
            else:
                out = _batchnorm(conv(act, w1), g1, b1, relu=True)
                res = act
            out = _batchnorm(conv(out, w2), g2, b2, relu=False)
            act = jnp.maximum(out + res, 0.0)

        # --- head: AvgPool2d(3,1) folded into fc1, then fc1 -> fc2 -> fc3 -----
        w1s, fb1 = next(it)[...], next(it)[...]
        w2f, fb2 = next(it)[...], next(it)[...]
        w3f, fb3 = next(it)[...], next(it)[...]

        # Put the batch index on sublanes: (B*C, HW), tile-aligned concat.
        a2 = jnp.concatenate(
            [act[:, n * HW:(n + 1) * HW] for n in range(BATCH)], axis=0)
        # Per-channel partial fc1: columns are (c, j) pairs.
        b2 = jnp.dot(a2, w1s, preferred_element_type=jnp.float32)   # (B*C, C*F1)
        # Keep only matching-channel columns, then sum channels per image.
        x2 = jnp.dot(seg_ref[...], b2 * diag_ref[...],
                     preferred_element_type=jnp.float32)             # (B, C*F1)
        h = jnp.maximum(
            jnp.dot(x2, fold_ref[...], preferred_element_type=jnp.float32)
            + fb1, 0.0)                                               # (B, 32)
        h = jnp.maximum(
            jnp.dot(h, w2f, preferred_element_type=jnp.float32) + fb2, 0.0)
        out_ref[...] = (jnp.dot(h, w3f, preferred_element_type=jnp.float32)
                        + fb3)                                        # (B, 1)

    return kernel


# -----------------------------------------------------------------------------
# Wrapper-side constants
# -----------------------------------------------------------------------------
def _conv_masks():
    """Nine (1, L) lane masks implementing the 3x3 conv's zero padding (pad=1)."""
    f = np.arange(L)
    y = (f // IMG) % IMG
    x = f % IMG
    m = np.zeros((9, 1, L), np.float32)
    for k in range(9):
        dy, dx = divmod(k, 3)
        m[k, 0] = ((y + dy - 1 >= 0) & (y + dy - 1 < IMG) &
                   (x + dx - 1 >= 0) & (x + dx - 1 < IMG))
    return m


def _fc_constants():
    """Selector matrices for the collapsed fc1 (block-diag pick, segment sum, fold)."""
    c_last = OUT_CHANNELS[-1]
    f1 = FC_NEURONS[0]
    ncol = c_last * f1                        # 256
    rows = BATCH * C_MAX                      # 16
    diag = np.zeros((rows, ncol), np.float32)
    for r in range(rows):
        c = r % C_MAX
        if c < c_last:
            diag[r, c * f1:(c + 1) * f1] = 1.0
    seg = np.zeros((BATCH, rows), np.float32)
    for n in range(BATCH):
        seg[n, n * C_MAX:(n + 1) * C_MAX] = 1.0
    fold = np.zeros((ncol, f1), np.float32)
    for k in range(ncol):
        fold[k, k % f1] = 1.0
    return diag, seg, fold


def _flatten_params(params, blocks):
    flat = [params["conv_w"], params["bn_gamma"], params["bn_beta"]]
    for blk, (_, _, has_ds) in zip(params["blocks"], blocks):
        if has_ds:
            ds = blk["downsample"]
            flat += [jnp.concatenate([blk["conv1_w"], ds["conv_w"]], axis=0),
                     jnp.concatenate([blk["bn1_gamma"], ds["bn_gamma"]], axis=0),
                     jnp.concatenate([blk["bn1_beta"], ds["bn_beta"]], axis=0)]
        else:
            flat += [blk["conv1_w"], blk["bn1_gamma"], blk["bn1_beta"]]
        flat += [blk["conv2_w"], blk["bn2_gamma"], blk["bn2_beta"]]
    flat += [params["fc1_ws"], params["fc1_b"], params["fc2_w"],
             params["fc2_b"], params["fc3_w"], params["fc3_b"]]
    return flat


@functools.partial(jax.jit, static_argnums=0)
def _forward_impl(roll_sign, x_nchw, params):
    blocks = _block_structure()
    n, c, h, w = x_nchw.shape
    # One-time layout change to channels-major (C, N*H*W), channels padded to 8;
    # everything else runs inside the single fused kernel.
    x_cm = jnp.transpose(x_nchw, (1, 0, 2, 3)).reshape(c, n * h * w)
    x_cm = jnp.pad(x_cm, ((0, C_MAX - c), (0, 0)))
    diag, seg, fold = _fc_constants()
    inputs = ([x_cm, jnp.asarray(_conv_masks()), jnp.asarray(diag),
               jnp.asarray(seg), jnp.asarray(fold)]
              + _flatten_params(params, blocks))

    return pl.pallas_call(
        _make_kernel(blocks, len(inputs), roll_sign),
        out_shape=jax.ShapeDtypeStruct((BATCH, NUM_CLASSES), jnp.float32),
        in_specs=[_vmem()] * len(inputs),
        out_specs=_vmem(),
    )(*inputs)


def resnet_forward(x_nchw, params):
    """Forward pass matching ResNet.forward (PyTorch-style NCHW input)."""
    return _forward_impl(_roll_sign(), x_nchw, params)


# -----------------------------------------------------------------------------
# Deterministic parameter construction (packed layouts)
# -----------------------------------------------------------------------------
def _pack_conv_w(key, cin, cout):
    """Packed conv weight (C_MAX, 9*C_MAX): column k*C_MAX + ci = tap k, input ch ci.

    A PyTorch weight (cout, cin, 3, 3) maps here via
    w.permute(0, 2, 3, 1) placed at [:cout, k*C_MAX : k*C_MAX + cin] for k = dy*3+dx;
    unused rows/columns are zero (padded channels never contribute).
    """
    w = 0.1 * jax.random.normal(key, (9, cout, cin), jnp.float32)
    wt = jnp.transpose(w, (1, 0, 2))                               # (cout, 9, cin)
    wt = jnp.pad(wt, ((0, C_MAX - cout), (0, 0), (0, C_MAX - cin)))
    return wt.reshape(C_MAX, KTAP)


def make_params(key):
    blocks = _block_structure()
    keys = jax.random.split(key, 4 + len(blocks))
    params = {
        "conv_w": _pack_conv_w(keys[0], IN_CHANNEL, IN_CHANNEL),
        "bn_gamma": jnp.ones((C_MAX, 1), jnp.float32),
        "bn_beta": jnp.zeros((C_MAX, 1), jnp.float32),
        "blocks": [],
    }
    for i, (cin, cout, has_ds) in enumerate(blocks):
        k1, k2, k3 = jax.random.split(keys[1 + i], 3)
        blk = {
            "conv1_w": _pack_conv_w(k1, cin, cout),
            "bn1_gamma": jnp.ones((C_MAX, 1), jnp.float32),
            "bn1_beta": jnp.zeros((C_MAX, 1), jnp.float32),
            "conv2_w": _pack_conv_w(k2, cout, cout),
            "bn2_gamma": jnp.ones((C_MAX, 1), jnp.float32),
            "bn2_beta": jnp.zeros((C_MAX, 1), jnp.float32),
            "downsample": None,
        }
        if has_ds:
            blk["downsample"] = {
                "conv_w": _pack_conv_w(k3, cin, cout),
                "bn_gamma": jnp.ones((C_MAX, 1), jnp.float32),
                "bn_beta": jnp.zeros((C_MAX, 1), jnp.float32),
            }
        params["blocks"].append(blk)

    c_last = OUT_CHANNELS[-1]
    f1 = FC_NEURONS[0]
    num_neurons = POOL * POOL * c_last                  # (img_size-2)^2 * C = 1568
    dims = (num_neurons, FC_NEURONS[0], FC_NEURONS[1], NUM_CLASSES)

    kw, kb = jax.random.split(keys[1 + len(blocks)])
    w1 = 0.05 * jax.random.normal(kw, (dims[0], dims[1]), jnp.float32)
    # Fold AvgPool2d(3,1) + NCHW flatten into fc1: spread each pooled-weight row
    # (divided by 9) over its 3x3 input window, then re-lay as
    # fc1_ws[pos, c*32 + j] = w1_eff[c, pos, j]  (pos = y*16 + x within an image).
    w1r = w1.reshape(c_last, POOL, POOL, f1)
    w1_eff = jnp.zeros((c_last, IMG, IMG, f1), jnp.float32)
    for dy in range(3):
        for dx in range(3):
            w1_eff = w1_eff.at[:, dy:dy + POOL, dx:dx + POOL, :].add(w1r / 9.0)
    params["fc1_ws"] = jnp.transpose(
        w1_eff.reshape(c_last, HW, f1), (1, 0, 2)).reshape(HW, c_last * f1)
    params["fc1_b"] = 0.05 * jax.random.normal(kb, (1, dims[1]), jnp.float32)

    for i in (2, 3):
        kw, kb = jax.random.split(keys[len(blocks) + i])
        params[f"fc{i}_w"] = 0.05 * jax.random.normal(
            kw, (dims[i - 1], dims[i]), jnp.float32)
        params[f"fc{i}_b"] = 0.05 * jax.random.normal(
            kb, (1, dims[i]), jnp.float32)
    return params


# -----------------------------------------------------------------------------
if __name__ == "__main__":
    key = jax.random.PRNGKey(0)
    kx, kp = jax.random.split(key)
    x = jax.random.normal(kx, (BATCH, IN_CHANNEL, IMG, IMG), jnp.float32)
    params = make_params(kp)

    out = resnet_forward(x, params)
    out = jax.block_until_ready(out)
    assert out.shape == (BATCH, NUM_CLASSES), out.shape
    assert bool(jnp.all(jnp.isfinite(out))), "non-finite output"
    print("KERNEL_OK")
</pallas_src>

<mosaic_0001>
module attributes {stable_mosaic.version = 11 : i64} {
  func.func @probe(%arg0: memref<8x128xf32, #tpu.memory_space<vmem>>, %arg1: memref<8x128xf32, #tpu.memory_space<vmem>>) attributes {dimension_semantics = [], scalar_prefetch = 0 : i64, scratch_operands = 0 : i64, tpu.core_type = #tpu.core_type<tc>} {
    %c0 = arith.constant 0 : index
    %c0_0 = arith.constant 0 : index
    %0 = vector.load %arg0[%c0, %c0_0] : memref<8x128xf32, #tpu.memory_space<vmem>>, vector<8x128xf32>
    %c1_i32 = arith.constant 1 : i32
    %1 = tpu.dynamic_rotate %0 by %c1_i32 dim 1 : vector<8x128xf32>, i32 -> vector<8x128xf32>
    %c0_1 = arith.constant 0 : index
    %c0_2 = arith.constant 0 : index
    %2 = vector.load %arg1[%c0_1, %c0_2] : memref<8x128xf32, #tpu.memory_space<vmem>>, vector<8x128xf32>
    tpu.vector_store %arg1[%c0_1, %c0_2], %1 {strides = array<i32>} : memref<8x128xf32, #tpu.memory_space<vmem>>, vector<8x128xf32>,
    return
  }
}

</mosaic_0001>

<llo_original>
// kernel: tpu_custom_call.1
$region0: #{tpu_custom_call.1}
  #allocation0 [shape = 'u32[]', space=smem, size = 0x4, offset = 0x4, fixed_abs, tag = 'smem constant byte address 0x4 - core index']
  #allocation1 [shape = 'u32[144,128]{1,0:T(1,128)}', space=vmem, size = 0x12000, scoped, tag = 'internal scratch']
  %s0 = inlined_call_operand.hbm [shape: f32[8,128], index: 0, kind: input, shape index: {}]
  %s1 = inlined_call_operand.hbm [shape: f32[8,128], index: 1, kind: output, shape index: {}]
  %s2 = sld [smem:[#allocation0]]
  $region18: #{tpu_custom_call.1} parent=0
    _
  %s4 = ssub.s32 1, %s2
  %s5 = scalar_select 0, %s4, %s2
  $region1: #{tpu_custom_call.1} parent=0
    #allocation2 [shape = 'u8[4096]{0}', space=vmem, size = 0x1000, scoped, tag = 'input window, operand 0, single buffered']
    #allocation3 [shape = 's32[1]{0}', space=sflag, size = 0x4, scoped, tag = 'scoped memory for tpu_custom_call.1']
    #allocation4 [shape = 's32[1]{0}', space=sflag, size = 0x4, scoped, tag = 'scoped memory for tpu_custom_call.1']
    #allocation5 [shape = 'u8[4096]{0}', space=vmem, size = 0x1000, scoped, tag = 'output window, operand 0, single buffered']
    %6 = vsyncpa [#allocation3], 0
    %7 = vsyncpa [#allocation4], 0
    // Predicated region
    $region2: #{tpu_custom_call.1} parent=1 // pred_check
      _
    $region3: #{tpu_custom_call.1} parent=1 // pred_check_branch
      %9 = sbr.rel (0) target = $region5
    $region4: #{tpu_custom_call.1} parent=1 // pred_region
      %s11 = ssub.s32 128, 128
      %12 = vsyncadd [#allocation3], %s11
      %s14 = sshll.u32 [#allocation2], 4
      %s15 = int_to_ptr.vmem [resolvable:$true] %s14
      %17 = dma.hbm_to_vmem [thread:$0]  %s0, 128, %s15, [#allocation3]
    $region5: #{tpu_custom_call.1} parent=1 // pred_fallthru
      _
    // Predicated region
    $region6: #{tpu_custom_call.1} parent=1 // pred_check
      _
    $region7: #{tpu_custom_call.1} parent=1 // pred_check_branch
      %19 = sbr.rel (0) target = $region9
    $region8: #{tpu_custom_call.1} parent=1 // pred_region
      %20 = dma.done [#allocation3], 128
    $region9: #{tpu_custom_call.1} parent=1 // pred_fallthru
      _
    %v21 = vld [vmem:[#allocation2] sm:$0xff]
    %22 = vrot.lane.b32.xlu0 %v21, 1
    %v23 = vpop.permute.xlu0 %22
    %24 = vst [vmem:[#allocation5] sm:$0xff] %v23
    // Predicated region
    $region10: #{tpu_custom_call.1} parent=1 // pred_check
      _
    $region11: #{tpu_custom_call.1} parent=1 // pred_check_branch
      %26 = sbr.rel (0) target = $region13
    $region12: #{tpu_custom_call.1} parent=1 // pred_region
      %s28 = ssub.s32 128, 128
      %29 = vsyncadd [#allocation4], %s28
      %s31 = sshll.u32 [#allocation5], 4
      %s32 = int_to_ptr.vmem [resolvable:$true] %s31
      %34 = dma.vmem_to_hbm [thread:$0]  %s32, 128, %s1, [#allocation4]
    $region13: #{tpu_custom_call.1} parent=1 // pred_fallthru
      _
    // Predicated region
    $region14: #{tpu_custom_call.1} parent=1 // pred_check
      _
    $region15: #{tpu_custom_call.1} parent=1 // pred_check_branch
      %36 = sbr.rel (0) target = $region17
    $region16: #{tpu_custom_call.1} parent=1 // pred_region
      %37 = dma.done [#allocation4], 128
    $region17: #{tpu_custom_call.1} parent=1 // pred_fallthru
      _
    %38 = vsyncpa [#allocation3], 1
    %39 = vsyncpa [#allocation4], 1

</llo_original>
